<compile_context>
chip_gen: v7x
topology: tpu7x:2x2x1
jax: 0.10.0
libtpu: 0.0.40
codegen_flags: <defaults>
</compile_context>

<pallas_src>
import jax
import jax.numpy as jnp
import numpy as np
from jax import lax
from jax.experimental import pallas as pl
from jax.experimental.pallas import tpu as pltpu

_LOG_EPS = 6.9077542789816375  # constant from translatedSigmoid (= -log(1e-3))
_SENTINEL = 1e20               # fake-point distance used for P-axis padding


def _round_up(a, b):
    return ((a + b - 1) // b) * b


def _cdiv(a, b):
    return -(-a // b)


def _distnet_kernel(params_ref, pts_ref, x_ref, out_ref, min_ref):
    """Grid = (batch tiles, point chunks).

    params_ref : SMEM f32[2]                 [alpha, 1/beta]       (precomputed)
    pts_ref    : VMEM f32[CP, dim+2]         [-2*p | ||p||^2 | 1]  chunk of points
    x_ref      : VMEM f32[dim+2, TILE_N]     [x ; 1 ; ||x||^2]     batch tile (lane-dense)
    out_ref    : VMEM f32[1, TILE_N]         lane-dense output row
    min_ref    : VMEM f32[1, TILE_N]         running min of D2 over point chunks
    """
    kp = pl.program_id(1)

    @pl.when(kp == 0)
    def _init():
        min_ref[...] = jnp.full(min_ref.shape, jnp.inf, dtype=jnp.float32)

    # scores[p, n] = ||x_n||^2 + ||p_p||^2 - 2 x_n . p_p, all produced by the MXU.
    scores = lax.dot_general(
        pts_ref[...], x_ref[...], (((1,), (0,)), ((), ())),
        preferred_element_type=jnp.float32)                    # (CP, TILE_N)
    min_ref[...] = jnp.minimum(min_ref[...],
                               jnp.min(scores, axis=0, keepdims=True))

    @pl.when(kp == pl.num_programs(1) - 1)
    def _finalize():
        alpha = params_ref[0]
        inv_beta = params_ref[1]
        # clamp(.,0) commutes with the min (monotone), applied on the reduced row.
        min_d = jnp.maximum(min_ref[...], 0.0)
        out_ref[...] = jax.nn.sigmoid((min_d + alpha) * inv_beta)


def _vmem_bytes(tile, cp, dim_aug):
    """Rough per-step VMEM footprint (double-buffered inputs/outputs + scores)."""
    sub = _round_up(dim_aug, 8)
    lane = _round_up(dim_aug, 128)
    return 4 * (2 * sub * tile        # x_aug blocks (double buffered, lane-dense)
                + 2 * cp * lane       # pts_aug blocks (double buffered)
                + cp * tile           # (CP, TILE_N) scores intermediate
                + 3 * 8 * tile)       # output blocks + running-min scratch


def distnet_forward(x, points, beta_param, *, tile_n=4096, chunk_p=256):
    """x: (N, dim), points: (num_points, dim), beta_param: scalar. Returns (N,)."""
    x = jnp.asarray(x, jnp.float32)
    points = jnp.asarray(points, jnp.float32)
    n, dim = x.shape
    num_points = points.shape[0]
    dim_aug = dim + 2

    # ---- grid-invariant scalar work hoisted out of the kernel ----------------
    beta = jax.nn.softplus(jnp.asarray(beta_param, jnp.float32)).reshape(())
    alpha = -beta * _LOG_EPS
    inv_beta = 1.0 / beta
    params = jnp.stack([alpha, inv_beta]).astype(jnp.float32)        # SMEM scalars

    # ---- fit the VMEM budget (v7x scoped limit ~32 MiB is the binding one) ---
    budget = 24 * 1024 * 1024
    while _vmem_bytes(tile_n, chunk_p, dim_aug) > budget and tile_n > 512:
        tile_n //= 2
    while _vmem_bytes(tile_n, chunk_p, dim_aug) > budget and chunk_p > 64:
        chunk_p //= 2

    # ---- batch tiling: pad only to 128, balanced tiles, >=2 steps if possible -
    n_pad128 = _round_up(n, 128)
    g_n = _cdiv(n_pad128, tile_n)
    if n_pad128 >= 256:
        g_n = max(g_n, 2)                     # keep both v7x TensorCores busy
    tile = _round_up(_cdiv(n_pad128, g_n), 128)
    n_pad = g_n * tile                        # waste bounded by ~g_n*128 rows

    # ---- point chunking (trailing reduction axis) -----------------------------
    p_pad8 = _round_up(num_points, 8)
    g_p = _cdiv(p_pad8, chunk_p)
    cp = _round_up(_cdiv(p_pad8, g_p), 8)
    p_pad = g_p * cp

    # ---- K-augmented operands --------------------------------------------------
    # x_aug rows:   [0:dim] = x^T, [dim] = 1, [dim+1] = ||x||^2   -> (dim+2, n_pad)
    x_pad = x if n_pad == n else jnp.pad(x, ((0, n_pad - n), (0, 0)))
    x_norm = jnp.sum(x_pad * x_pad, axis=-1)[None, :]
    x_aug = jnp.concatenate(
        [x_pad.T, jnp.ones((1, n_pad), jnp.float32), x_norm], axis=0)

    # pts_aug cols: [0:dim] = -2*p, [dim] = ||p||^2, [dim+1] = 1  -> (p_pad, dim+2)
    p_norm = jnp.sum(points * points, axis=-1, keepdims=True)
    pts_aug = jnp.concatenate(
        [-2.0 * points, p_norm, jnp.ones((num_points, 1), jnp.float32)], axis=1)
    if p_pad != num_points:
        # Padded fake points get a huge ||p||^2 so they never win the min.
        sentinel = jnp.zeros((p_pad - num_points, dim_aug), jnp.float32
                             ).at[:, dim].set(jnp.float32(_SENTINEL))
        pts_aug = jnp.concatenate([pts_aug, sentinel], axis=0)

    cost = pl.CostEstimate(
        flops=2 * n_pad * p_pad * dim_aug,
        transcendentals=n_pad,
        bytes_accessed=4 * (n_pad * dim_aug + g_n * p_pad * dim_aug + n_pad),
    )

    out = pl.pallas_call(
        _distnet_kernel,
        out_shape=jax.ShapeDtypeStruct((1, n_pad), jnp.float32),
        grid=(g_n, g_p),
        in_specs=[
            pl.BlockSpec(memory_space=pltpu.SMEM),                       # [alpha, 1/beta]
            pl.BlockSpec((cp, dim_aug), lambda i, k: (k, 0)),            # point chunk
            pl.BlockSpec((dim_aug, tile), lambda i, k: (0, i)),          # x tile (lane-dense)
        ],
        out_specs=pl.BlockSpec((1, tile), lambda i, k: (0, i)),          # lane-dense output
        scratch_shapes=[pltpu.VMEM((1, tile), jnp.float32)],             # running min
        compiler_params=pltpu.CompilerParams(
            dimension_semantics=("parallel", "arbitrary"),
            vmem_limit_bytes=28 * 1024 * 1024),
        cost_estimate=cost,
    )(params, pts_aug, x_aug)

    return out[0, :n]                                                    # (N,)


def distnet_reference_f64(x, points, beta_param):
    """float64 NumPy ground truth of the PyTorch module's forward."""
    x = np.asarray(x, np.float64)
    p = np.asarray(points, np.float64)
    t1 = (x ** 2).sum(-1, keepdims=True)
    t2 = (p ** 2).sum(-1, keepdims=True).T
    t3 = 2.0 * (x @ p.T)
    d2 = np.clip(t1 + t2 - t3, 0.0, None)
    min_d = d2.min(-1)
    beta = np.log1p(np.exp(np.float64(beta_param)))
    alpha = -beta * _LOG_EPS
    z = (min_d + alpha) / beta
    return np.where(z >= 0.0, 1.0 / (1.0 + np.exp(-np.abs(z))),
                    np.exp(-np.abs(z)) / (1.0 + np.exp(-np.abs(z))))


if __name__ == "__main__":
    # Small shapes consistent with DistNet(dim, num_points): x is (batch, dim).
    batch, dim, num_points = 8, 32, 16

    key = jax.random.PRNGKey(0)
    k_x, k_p, k_n = jax.random.split(key, 3)
    points = jax.random.normal(k_p, (num_points, dim), dtype=jnp.float32)
    # Queries near the learned points so the sigmoid is in its active range.
    x = points[jnp.arange(batch) % num_points] + 0.05 * jax.random.normal(
        k_x, (batch, dim), dtype=jnp.float32)
    beta_param = -3.5                       # translatedSigmoid init

    # Tolerance note: the module's own f32 formula cancels ~1e3x (terms ~64,
    # min_d ~0.08), so ~3e-5 absolute error in min_d is inherent; through the
    # 1/beta (~34x) gain and sigmoid' that bounds the output error well below 1e-3.
    TOL = 1e-3

    out = jax.block_until_ready(distnet_forward(x, points, jnp.float32(beta_param)))
    ref = distnet_reference_f64(x, points, beta_param)
    assert out.shape == (batch,)
    assert np.max(np.abs(np.asarray(out) - ref)) < TOL, (np.asarray(out), ref)

    # Exercise multi-tile batch grid + padded batch tail + multi-chunk P reduction.
    n2 = 300
    x2 = jax.random.normal(k_n, (n2, dim), dtype=jnp.float32)
    out2 = jax.block_until_ready(
        distnet_forward(x2, points, jnp.float32(beta_param), tile_n=128, chunk_p=8))
    ref2 = distnet_reference_f64(x2, points, beta_param)
    assert out2.shape == (n2,)
    assert np.max(np.abs(np.asarray(out2) - ref2)) < TOL

    # Exercise the sentinel-padded point rows (num_points not a multiple of 8).
    points3 = points[:13]
    out3 = jax.block_until_ready(distnet_forward(x2, points3, jnp.float32(beta_param)))
    ref3 = distnet_reference_f64(x2, points3, beta_param)
    assert out3.shape == (n2,)
    assert np.max(np.abs(np.asarray(out3) - ref3)) < TOL

    print("KERNEL_OK")
</pallas_src>

<mosaic_0001>
module attributes {stable_mosaic.version = 11 : i64} {
  func.func @_distnet_kernel(%arg0: i32, %arg1: i32, %arg2: memref<2xf32, #tpu.memory_space<smem>>, %arg3: memref<16x34xf32, #tpu.memory_space<vmem>>, %arg4: memref<34x128xf32, #tpu.memory_space<vmem>>, %arg5: memref<1x128xf32, #tpu.memory_space<vmem>>, %arg6: memref<1x128xf32, #tpu.memory_space<vmem>>) attributes {dimension_semantics = [#tpu.dimension_semantics<parallel>, #tpu.dimension_semantics<arbitrary>], iteration_bounds = array<i64: 1, 1>, scalar_prefetch = 0 : i64, scratch_operands = 1 : i64, tpu.core_type = #tpu.core_type<tc>, window_params = [{transform_indices = @transform_0, window_bounds = array<i64: 2>}, {transform_indices = @transform_1, window_bounds = array<i64: 16, 34>}, {transform_indices = @transform_2, window_bounds = array<i64: 34, 128>}, {transform_indices = @transform_3, window_bounds = array<i64: 1, 128>}]} {
    %c0_i32 = arith.constant 0 : i32
    %0 = arith.cmpi eq, %arg1, %c0_i32 : i32
    %1 = arith.extui %0 : i1 to i32
    %c0_i32_0 = arith.constant 0 : i32
    %2 = arith.cmpi ne, %1, %c0_i32_0 : i32
    scf.if %2 {
      %cst_11 = arith.constant 0x7F800000 : f32
      %14 = vector.broadcast %cst_11 : f32 to vector<1x128xf32>
      %c0_12 = arith.constant 0 : index
      %c0_13 = arith.constant 0 : index
      %15 = vector.load %arg6[%c0_12, %c0_13] : memref<1x128xf32, #tpu.memory_space<vmem>>, vector<1x128xf32>
      tpu.vector_store %arg6[%c0_12, %c0_13], %14 {strides = array<i32>} : memref<1x128xf32, #tpu.memory_space<vmem>>, vector<1x128xf32>,
    } else {
    }
    %c0 = arith.constant 0 : index
    %c0_1 = arith.constant 0 : index
    %3 = vector.load %arg3[%c0, %c0_1] : memref<16x34xf32, #tpu.memory_space<vmem>>, vector<16x34xf32>
    %c0_2 = arith.constant 0 : index
    %c0_3 = arith.constant 0 : index
    %4 = vector.load %arg4[%c0_2, %c0_3] : memref<34x128xf32, #tpu.memory_space<vmem>>, vector<34x128xf32>
    %cst = arith.constant dense<0.000000e+00> : vector<16x128xf32>
    %5 = tpu.matmul %3, %4, %cst {dimension_numbers = #tpu.dot_dimension_numbers<[1], [0], [0], [1], [0, 0, 1, 1], [], []>} : vector<16x34xf32>, vector<34x128xf32>, vector<16x128xf32> -> vector<16x128xf32>
    %c0_4 = arith.constant 0 : index
    %c0_5 = arith.constant 0 : index
    %6 = vector.load %arg6[%c0_4, %c0_5] : memref<1x128xf32, #tpu.memory_space<vmem>>, vector<1x128xf32>
    %cst_6 = arith.constant dense<0x7F800000> : vector<128xf32>
    %7 = vector.multi_reduction <minimumf>, %5, %cst_6 [0] : vector<16x128xf32> to vector<128xf32>
    %8 = vector.shape_cast %7 : vector<128xf32> to vector<1x128xf32>
    %9 = arith.minimumf %6, %8 : vector<1x128xf32>
    %c0_7 = arith.constant 0 : index
    %c0_8 = arith.constant 0 : index
    %10 = vector.load %arg6[%c0_7, %c0_8] : memref<1x128xf32, #tpu.memory_space<vmem>>, vector<1x128xf32>
    tpu.vector_store %arg6[%c0_7, %c0_8], %9 {strides = array<i32>} : memref<1x128xf32, #tpu.memory_space<vmem>>, vector<1x128xf32>,
    %c0_i32_9 = arith.constant 0 : i32
    %11 = arith.cmpi eq, %arg1, %c0_i32_9 : i32
    %12 = arith.extui %11 : i1 to i32
    %c0_i32_10 = arith.constant 0 : i32
    %13 = arith.cmpi ne, %12, %c0_i32_10 : i32
    scf.if %13 {
      %c0_11 = arith.constant 0 : index
      %14 = memref.load %arg2[%c0_11] : memref<2xf32, #tpu.memory_space<smem>>
      %c1 = arith.constant 1 : index
      %15 = memref.load %arg2[%c1] : memref<2xf32, #tpu.memory_space<smem>>
      %c0_12 = arith.constant 0 : index
      %c0_13 = arith.constant 0 : index
      %16 = vector.load %arg6[%c0_12, %c0_13] : memref<1x128xf32, #tpu.memory_space<vmem>>, vector<1x128xf32>
      %cst_14 = arith.constant 0.000000e+00 : f32
      %17 = vector.broadcast %cst_14 : f32 to vector<1x128xf32>
      %18 = arith.maximumf %16, %17 : vector<1x128xf32>
      %19 = vector.broadcast %14 : f32 to vector<1x128xf32>
      %20 = arith.addf %18, %19 : vector<1x128xf32>
      %21 = vector.broadcast %15 : f32 to vector<1x128xf32>
      %22 = arith.mulf %20, %21 : vector<1x128xf32>
      %23 = arith.negf %22 : vector<1x128xf32>
      %24 = math.exp %23 : vector<1x128xf32>
      %cst_15 = arith.constant 1.000000e+00 : f32
      %25 = vector.broadcast %cst_15 : f32 to vector<1x128xf32>
      %26 = arith.addf %25, %24 : vector<1x128xf32>
      %27 = arith.divf %25, %26 : vector<1x128xf32>
      %c0_16 = arith.constant 0 : index
      %c0_17 = arith.constant 0 : index
      %28 = vector.load %arg5[%c0_16, %c0_17] : memref<1x128xf32, #tpu.memory_space<vmem>>, vector<1x128xf32>
      tpu.vector_store %arg5[%c0_16, %c0_17], %27 {strides = array<i32>} : memref<1x128xf32, #tpu.memory_space<vmem>>, vector<1x128xf32>,
    } else {
    }
    return
  }
  func.func @transform_0(%arg0: i32, %arg1: i32) -> i32 {
    %c0_i32 = arith.constant 0 : i32
    %c0_i32_0 = arith.constant 0 : i32
    return %c0_i32 : i32
  }
  func.func @transform_1(%arg0: i32, %arg1: i32) -> (i32, i32) {
    %c0_i32 = arith.constant 0 : i32
    %c0_i32_0 = arith.constant 0 : i32
    return %arg1, %c0_i32 : i32, i32
  }
  func.func @transform_2(%arg0: i32, %arg1: i32) -> (i32, i32) {
    %c0_i32 = arith.constant 0 : i32
    %c0_i32_0 = arith.constant 0 : i32
    return %c0_i32, %arg0 : i32, i32
  }
  func.func @transform_3(%arg0: i32, %arg1: i32) -> (i32, i32) {
    %c0_i32 = arith.constant 0 : i32
    %c0_i32_0 = arith.constant 0 : i32
    return %c0_i32, %arg0 : i32, i32
  }
}

</mosaic_0001>

<llo_original>
// kernel: tpu_custom_call.1
$region0: #{tpu_custom_call.1}
  #allocation0 [shape = 'u32[]', space=smem, size = 0x4, offset = 0x4, fixed_abs, tag = 'smem constant byte address 0x4 - core index']
  #allocation1 [shape = 'u32[144,128]{1,0:T(1,128)}', space=vmem, size = 0x12000, scoped, tag = 'internal scratch']
  #allocation2 [shape = 'f32[1,128]{1,0:T(1,128)}', space=vmem, size = 0x200, scoped, tag = 'scratch operand']
  %s0 = inlined_call_operand.hbm [shape: f32[2], index: 0, kind: input, shape index: {}]
  %s1 = inlined_call_operand.hbm [shape: f32[16,34], index: 1, kind: input, shape index: {}]
  %s2 = inlined_call_operand.hbm [shape: f32[34,128], index: 2, kind: input, shape index: {}]
  %s3 = inlined_call_operand.hbm [shape: f32[1,128], index: 3, kind: output, shape index: {}]
  %s4 = sld [smem:[#allocation0]]
  $region42: #{tpu_custom_call.1} parent=0
    _
  %s6 = ssub.s32 1, %s4
  %s7 = scalar_select 0, %s6, %s4
  $region1: #{tpu_custom_call.1} parent=0
    #allocation3 [shape = 'u8[512]{0}', space=smem, size = 0x200, scoped, tag = 'input window, operand 0, single buffered']
    #allocation4 [shape = 's32[1]{0}', space=sflag, size = 0x4, scoped, tag = 'scoped memory for tpu_custom_call.1']
    #allocation5 [shape = 's32[1]{0}', space=sflag, size = 0x4, scoped, tag = 'scoped memory for tpu_custom_call.1']
    #allocation6 [shape = 's32[1]{0}', space=sflag, size = 0x4, scoped, tag = 'scoped memory for tpu_custom_call.1']
    #allocation7 [shape = 'u8[8192]{0}', space=vmem, size = 0x2000, scoped, tag = 'input window, operand 1, single buffered']
    #allocation8 [shape = 'u8[20480]{0}', space=vmem, size = 0x5000, scoped, tag = 'input window, operand 2, single buffered']
    #allocation9 [shape = 's32[1]{0}', space=sflag, size = 0x4, scoped, tag = 'scoped memory for tpu_custom_call.1']
    #allocation10 [shape = 'u8[512]{0}', space=vmem, size = 0x400, scoped, tag = 'output window, operand 0, single buffered']
    %8 = vsyncpa [#allocation6], 0
    %9 = vsyncpa [#allocation4], 0
    %10 = vsyncpa [#allocation9], 0
    %11 = vsyncpa [#allocation5], 0
    // Predicated region
    $region2: #{tpu_custom_call.1} parent=1 // pred_check
      _
    $region3: #{tpu_custom_call.1} parent=1 // pred_check_branch
      %13 = sbr.rel (0) target = $region5
    $region4: #{tpu_custom_call.1} parent=1 // pred_region
      %s15 = ssub.s32 16, 16
      %16 = vsyncadd [#allocation6], %s15
      %19 = dma.hbm_to_smem %s0, 16, [#allocation3], [#allocation6]
    $region5: #{tpu_custom_call.1} parent=1 // pred_fallthru
      _
    // Predicated region
    $region6: #{tpu_custom_call.1} parent=1 // pred_check
      _
    $region7: #{tpu_custom_call.1} parent=1 // pred_check_branch
      %21 = sbr.rel (0) target = $region9
    $region8: #{tpu_custom_call.1} parent=1 // pred_region
      %s23 = ssub.s32 256, 256
      %24 = vsyncadd [#allocation4], %s23
      %s25 = sshll.u32 [#allocation7], 4
      %s26 = int_to_ptr.vmem [resolvable:$true] %s25
      %31 = dma.hbm_to_vmem [thread:$0]  %s1, 256, %s26, [#allocation4], 128, 128, 8
    $region9: #{tpu_custom_call.1} parent=1 // pred_fallthru
      _
    // Predicated region
    $region10: #{tpu_custom_call.1} parent=1 // pred_check
      _
    $region11: #{tpu_custom_call.1} parent=1 // pred_check_branch
      %33 = sbr.rel (0) target = $region13
    $region12: #{tpu_custom_call.1} parent=1 // pred_region
      %s35 = ssub.s32 640, 640
      %36 = vsyncadd [#allocation9], %s35
      %s37 = sshll.u32 [#allocation8], 4
      %s38 = int_to_ptr.vmem [resolvable:$true] %s37
      %43 = dma.hbm_to_vmem [thread:$0]  %s2, 640, %s38, [#allocation9], 128, 128, 8
    $region13: #{tpu_custom_call.1} parent=1 // pred_fallthru
      _
    // Predicated region
    $region14: #{tpu_custom_call.1} parent=1 // pred_check
      _
    $region15: #{tpu_custom_call.1} parent=1 // pred_check_branch
      %45 = sbr.rel (0) target = $region17
    $region16: #{tpu_custom_call.1} parent=1 // pred_region
      %46 = dma.done [#allocation6], 16
    $region17: #{tpu_custom_call.1} parent=1 // pred_fallthru
      _
    // Predicated region
    $region18: #{tpu_custom_call.1} parent=1 // pred_check
      _
    $region19: #{tpu_custom_call.1} parent=1 // pred_check_branch
      %48 = sbr.rel (0) target = $region21
    $region20: #{tpu_custom_call.1} parent=1 // pred_region
      %49 = dma.done [#allocation4], 256
    $region21: #{tpu_custom_call.1} parent=1 // pred_fallthru
      _
    // Predicated region
    $region22: #{tpu_custom_call.1} parent=1 // pred_check
      _
    $region23: #{tpu_custom_call.1} parent=1 // pred_check_branch
      %51 = sbr.rel (0) target = $region25
    $region24: #{tpu_custom_call.1} parent=1 // pred_region
      %52 = dma.done [#allocation9], 640
    $region25: #{tpu_custom_call.1} parent=1 // pred_fallthru
      _
    %53 = sfence
    %p54 = scmp.eq.s32.totalorder 0, 0
    // Predicated region
    $region26: #{tpu_custom_call.1} parent=1 // pred_check
      %p55 = pneg %p54
    $region27: #{tpu_custom_call.1} parent=1 // pred_check_branch
      %57 = sbr.rel (%p55) target = $region29
    $region28: #{tpu_custom_call.1} parent=1 // pred_region
      %58 = vst [vmem:[#allocation2] sm:$0x1] inf
    $region29: #{tpu_custom_call.1} parent=1 // pred_fallthru
      _
    %v59 = vld [vmem:[#allocation7] sm:$0xff]
    %v60 = vld [vmem:[#allocation7 + $0x8] sm:$0xff]
    %v61 = vld [vmem:[#allocation8] sm:$0xff]
    %v62 = vld [vmem:[#allocation8 + $0x8] sm:$0xff]
    %v63 = vld [vmem:[#allocation8 + $0x10] sm:$0xff]
    %v64 = vld [vmem:[#allocation8 + $0x18] sm:$0xff]
    %v65 = vld [vmem:[#allocation8 + $0x20] sm:$0x3]
    %vm66 = vcmask 277504
    %v68 = vsel %vm66, %v59, 0
    %v71 = vsel %vm66, %v60, 0
    %vm73 = vcmask 1041408
    %v75 = vsel %vm73, %v65, 0
    %77 = vmatprep.subr.mxu0 0.0
    %78 = vmatpush1.msra.mxu0 %v61
    %79 = vmatprep.subr.mxu0 0.0
    %80 = vmatpush1.msra.mxu0 %v62
    %81 = vmatprep.subr.mxu0 0.0
    %82 = vmatpush1.msra.mxu0 %v63
    %83 = vmatprep.subr.mxu0 0.0
    %84 = vmatpush1.msra.mxu0 %v64
    %85 = vmatprep.subr.mxu0 0.0
    %86 = vmatpush1.msra.mxu0 %v75
    %87 = vmatprep.subr.mxu0 0.0
    %88 = vmatpush1.msra.mxu0 0.0
    %89 = vmatprep.subr.mxu0 0.0
    %90 = vmatpush1.msra.mxu0 0.0
    %91 = vmatprep.subr.mxu0 0.0
    %92 = vmatpush1.msra.mxu0 0.0
    %93 = vmatprep.subr.mxu0 0.0
    %94 = vmatpush1.msra.mxu0 0.0
    %95 = vmatprep.subr.mxu0 0.0
    %96 = vmatpush1.msra.mxu0 0.0
    %97 = vmatprep.subr.mxu0 0.0
    %98 = vmatpush1.msra.mxu0 0.0
    %99 = vmatprep.subr.mxu0 0.0
    %100 = vmatpush1.msra.mxu0 0.0
    %101 = vmatprep.subr.mxu0 0.0
    %102 = vmatpush1.msra.mxu0 0.0
    %103 = vmatprep.subr.mxu0 0.0
    %104 = vmatpush1.msra.mxu0 0.0
    %105 = vmatprep.subr.mxu0 0.0
    %106 = vmatpush1.msra.mxu0 0.0
    %107 = vmatprep.subr.mxu0 0.0
    %108 = vmatpush1.msra.mxu0 0.0
    %109 = vmatprep.subr.mxu0 0.0
    %110 = vmatpush1.msra.mxu0 0.0
    %111 = vmatprep.subr.mxu0 0.0
    %112 = vmatpush1.msra.mxu0 0.0
    %113 = vmatprep.subr.mxu0 0.0
    %114 = vmatpush1.msra.mxu0 0.0
    %115 = vmatprep.subr.mxu0 0.0
    %116 = vmatpush1.msra.mxu0 0.0
    %117 = vmatprep.subr.mxu0 0.0
    %118 = vmatpush1.msra.mxu0 0.0
    %119 = vmatprep.subr.mxu0 0.0
    %120 = vmatpush1.msra.mxu0 0.0
    %121 = vmatprep.subr.mxu0 0.0
    %122 = vmatpush1.msra.mxu0 0.0
    %123 = vmatprep.subr.mxu0 0.0
    %124 = vmatpush1.msra.mxu0 0.0
    %125 = vmatprep.subr.mxu0 0.0
    %126 = vmatpush1.msra.mxu0 0.0
    %127 = vmatprep.subr.mxu0 0.0
    %128 = vmatpush1.msra.mxu0 0.0
    %129 = vmatprep.subr.mxu0 0.0
    %130 = vmatpush1.msra.mxu0 0.0
    %131 = vmatprep.subr.mxu0 0.0
    %132 = vmatpush1.msra.mxu0 0.0
    %133 = vmatprep.subr.mxu0 0.0
    %134 = vmatpush1.msra.mxu0 0.0
    %135 = vmatprep.subr.mxu0 0.0
    %136 = vmatpush1.msra.mxu0 0.0
    %137 = vmatprep.subr.mxu0 0.0
    %138 = vmatpush1.msra.mxu0 0.0
    %139 = vmatprep.subr.mxu0 0.0
    %140 = vmatpush1.msra.mxu0 0.0
    %141 = vmatprep.mubr.f32.mxu0 0.0
    %142 = vmatmul.mubr.f32.gmra.mrb[0].mxu0 %v68
    %v143 = vpop.f32.mrb[0].mxu0
    %v144 = vadd.f32 0.0, %v143
    %v145 = vpop.f32.mrb[0].mxu0
    %146 = vmatprep.mubr.f32.mxu0 0.0
    %147 = vmatmul.mubr.f32.gmra.mrb[0].mxu0 %v71
    %v148 = vpop.f32.mrb[0].mxu0
    %v149 = vadd.f32 0.0, %v148
    %v150 = vpop.f32.mrb[0].mxu0
    %151 = vdwg.mxu0
    %v152 = vld [vmem:[#allocation2] sm:$0x1]
    %v153 = vmin.f32 %v144, %v149
    %v154 = vrot.slane %v153, 4
    %v155 = vmin.f32 %v153, %v154
    %v156 = vrot.slane %v155, 2
    %v157 = vmin.f32 %v155, %v156
    %v158 = vrot.slane %v157, 1
    %v159 = vmin.f32 %v157, %v158
    %v160 = vmin.f32 %v152, %v159
    %161 = vst [vmem:[#allocation2] sm:$0x1] %v160
    // Predicated region
    $region30: #{tpu_custom_call.1} parent=1 // pred_check
      %p162 = pneg %p54
    $region31: #{tpu_custom_call.1} parent=1 // pred_check_branch
      %164 = sbr.rel (%p162) target = $region33
    $region32: #{tpu_custom_call.1} parent=1 // pred_region
      %s165 = sld [smem:[#allocation3]]
      %s166 = sld [smem:[#allocation3 + $0x1]]
      %v167 = vld [vmem:[#allocation2] sm:$0x1]
      %v168 = vmax.f32 %v167, 0.0
      %v169 = vstv %s165
      %v170 = vadd.f32 %v168, %v169
      %v171 = vstv %s166
      %v172 = vmul.f32 %v170, %v171
      %v173 = vxor.u32 %v172, 2147483648
      %v174 = vmul.f32 %v173, 1.442695
      %v175 = vpow.pop %v174
      %v176 = vadd.f32 %v175, 1.0
      %v177 = vrcp.pop %v176
      %v178 = vmul.f32 1.0, %v177
      %179 = vst [vmem:[#allocation10] sm:$0x1] %v178
    $region33: #{tpu_custom_call.1} parent=1 // pred_fallthru
      _
    // Predicated region
    $region34: #{tpu_custom_call.1} parent=1 // pred_check
      _
    $region35: #{tpu_custom_call.1} parent=1 // pred_check_branch
      %181 = sbr.rel (0) target = $region37
    $region36: #{tpu_custom_call.1} parent=1 // pred_region
      %s183 = ssub.s32 16, 16
      %184 = vsyncadd [#allocation5], %s183
      %s186 = sshll.u32 [#allocation10], 4
      %s187 = int_to_ptr.vmem [resolvable:$true] %s186
      %189 = dma.vmem_to_hbm [thread:$0]  %s187, 16, %s3, [#allocation5]
    $region37: #{tpu_custom_call.1} parent=1 // pred_fallthru
      _
    // Predicated region
    $region38: #{tpu_custom_call.1} parent=1 // pred_check
      _
    $region39: #{tpu_custom_call.1} parent=1 // pred_check_branch
      %191 = sbr.rel (0) target = $region41
    $region40: #{tpu_custom_call.1} parent=1 // pred_region
      %192 = dma.done [#allocation5], 16
    $region41: #{tpu_custom_call.1} parent=1 // pred_fallthru
      _
    %193 = vsyncpa [#allocation4], 1
    %194 = vsyncpa [#allocation9], 1
    %195 = vsyncpa [#allocation5], 1
    %196 = vsyncpa [#allocation6], 1

</llo_original>
